<compile_context>
chip_gen: v6e
topology: v6e:2x2x1
jax: 0.10.0
libtpu: 0.0.40
codegen_flags: <defaults>
</compile_context>

<pallas_src>
import functools

import jax
import jax.numpy as jnp
from jax import lax
from jax.experimental import pallas as pl
from jax.experimental.pallas import tpu as pltpu

_LANE = 128
_SUBLANE = 8
_BN_EPS = 1e-5  # PyTorch BatchNorm1d default


# --------------------------------------------------------------------------
# Fused kernel: whole forward pass in one trace
# --------------------------------------------------------------------------
def _fused_gcn_kernel(num_layers, pdims, n_true, n_pad, adj_ref, x_ref, *refs):
    # refs layout:
    #   hidden layer i < num_layers-1 : w_i (bf16), gamma_i, beta_i
    #   last layer                    : w_last (bf16), b_last
    #   final entry                   : out_ref
    out_ref = refs[-1]
    params = refs[:-1]

    # Row normalization D^-1 (A + I) without materializing I or adj_norm:
    # the +I contributes exactly +1 to every row sum and +h to every A@h.
    adj = adj_ref[...]                                        # bf16 [n_pad, n_pad]
    row_sum = jnp.sum(adj.astype(jnp.float32), axis=1, keepdims=True) + 1.0
    inv_row = pl.reciprocal(row_sum, approx=True)             # EUP slot (cheap)

    inv_n = 1.0 / float(n_true)
    if n_pad != n_true:
        row_ids = lax.broadcasted_iota(jnp.int32, (n_pad, 1), 0)
        row_mask = (row_ids < n_true).astype(jnp.float32)
    else:
        row_mask = None

    def propagate(h):
        # D^-1 (A + I) h  ==  (A @ h + h) * inv_row   (f32 accumulation)
        ah = jnp.dot(adj, h.astype(jnp.bfloat16),
                     preferred_element_type=jnp.float32)
        return (ah + h) * inv_row

    h = x_ref[...]                                            # f32 [n_pad, in_pad]
    idx = 0
    for layer in range(num_layers):
        in_pad, out_pad = pdims[layer], pdims[layer + 1]
        w = params[idx][...]                                  # bf16 [in_pad, out_pad]
        idx += 1
        if in_pad < out_pad:
            # aggregate first: N^2*in_pad + N*in_pad*out_pad flops
            h = jnp.dot(propagate(h).astype(jnp.bfloat16), w,
                        preferred_element_type=jnp.float32)
        else:
            # transform first: N*in_pad*out_pad + N^2*out_pad flops
            h = propagate(jnp.dot(h.astype(jnp.bfloat16), w,
                                  preferred_element_type=jnp.float32))

        if layer < num_layers - 1:
            gamma = params[idx][...]                          # f32 [1, out_pad]
            beta = params[idx + 1][...]                       # f32 [1, out_pad]
            idx += 2
            # Single-pass batch stats over the TRUE node count (padded rows are
            # exactly zero so they contribute nothing to the sums), then a
            # folded affine: 2 VPU ops per element instead of ~4.
            mean = jnp.sum(h, axis=0, keepdims=True) * inv_n
            msq = jnp.sum(h * h, axis=0, keepdims=True) * inv_n
            var = jnp.maximum(msq - mean * mean, 0.0)         # biased variance
            scale = gamma * lax.rsqrt(var + _BN_EPS)
            shift = beta - mean * scale
            h = jnp.maximum(h * scale + shift, 0.0)
            if row_mask is not None:
                h = h * row_mask      # keep padded rows zero for later stats
            # TODO(synk): dropout has p=0.0 in the reference config (no-op);
            # a non-zero p would use pltpu.prng_seed / pltpu.prng_random_bits.
        else:
            b = params[idx][...]                              # f32 [1, out_pad]
            idx += 1
            h = h + b

    out_ref[...] = h


# --------------------------------------------------------------------------
# Host-side wrapper: lane-dense padding + single pallas_call
# --------------------------------------------------------------------------
def _round_up(v, m):
    return (v + m - 1) // m * m


@jax.jit
def gcn_forward(x, adj, convs, bns):
    n, input_dim = x.shape
    num_layers = len(convs)
    dims = [input_dim] + [w.shape[1] for (w, _) in convs]
    pdims = [_round_up(d, _LANE) for d in dims]
    n_pad = _round_up(n, _SUBLANE)

    # Pad feature axes to 128 (lane-dense stores, full MXU tiles) and the node
    # axis to a sublane multiple.  Zero padding of W rows / activation columns
    # / adjacency rows+cols keeps results exact; padded rows are masked in BN.
    adj_p = jnp.pad(adj, ((0, n_pad - n), (0, n_pad - n))).astype(jnp.bfloat16)
    x_p = jnp.pad(x, ((0, n_pad - n), (0, pdims[0] - dims[0])))
    args = [adj_p, x_p]
    for i, (w, b) in enumerate(convs):
        w_p = jnp.pad(w, ((0, pdims[i] - dims[i]),
                          (0, pdims[i + 1] - dims[i + 1]))).astype(jnp.bfloat16)
        args.append(w_p)
        pad = pdims[i + 1] - dims[i + 1]
        if i < num_layers - 1:
            # bias dropped: it cancels exactly in the following BatchNorm.
            g, be = bns[i]
            args += [jnp.pad(g, ((0, 0), (0, pad))),
                     jnp.pad(be, ((0, 0), (0, pad)))]
        else:
            args.append(jnp.pad(b, ((0, 0), (0, pad))))

    # Size the scoped VMEM limit from the real footprint (defaults are only
    # 16/32 MiB); clamp to 64 MiB, the smallest physical VMEM (v7x).
    out_bytes = n_pad * pdims[-1] * 4
    arg_bytes = sum(a.size * a.dtype.itemsize for a in args)
    vmem_limit = int(min(max(3 * (arg_bytes + out_bytes) + (8 << 20), 32 << 20),
                         64 << 20))

    kernel = functools.partial(_fused_gcn_kernel, num_layers, tuple(pdims),
                               n, n_pad)
    out_padded = pl.pallas_call(
        kernel,
        out_shape=jax.ShapeDtypeStruct((n_pad, pdims[-1]), jnp.float32),
        in_specs=[pl.BlockSpec(memory_space=pltpu.MemorySpace.VMEM)] * len(args),
        out_specs=pl.BlockSpec(memory_space=pltpu.MemorySpace.VMEM),
        compiler_params=pltpu.CompilerParams(vmem_limit_bytes=vmem_limit),
    )(*args)
    return out_padded[:n, :dims[-1]]


# --------------------------------------------------------------------------
# Parameter init (glorot-uniform weights stored [in, out], zero biases,
# BatchNorm gamma=1 / beta=0) and a pure-JAX reference for validation
# --------------------------------------------------------------------------
def init_gcn_params(key, input_dim, hidden_dim, output_dim, num_layers):
    dims = [input_dim] + [hidden_dim] * (num_layers - 1) + [output_dim]
    convs, bns = [], []
    for i in range(num_layers):
        key, wk = jax.random.split(key)
        fan_in, fan_out = dims[i], dims[i + 1]
        limit = jnp.sqrt(6.0 / (fan_in + fan_out))
        w = jax.random.uniform(wk, (fan_in, fan_out), jnp.float32, -limit, limit)
        b = jnp.zeros((1, fan_out), jnp.float32)
        convs.append((w, b))
        if i < num_layers - 1:
            bns.append((jnp.ones((1, fan_out), jnp.float32),
                        jnp.zeros((1, fan_out), jnp.float32)))
    return convs, bns


def gcn_reference(x, adj, convs, bns):
    n = adj.shape[0]
    a = adj + jnp.eye(n, dtype=adj.dtype)
    adj_norm = a / jnp.sum(a, axis=1, keepdims=True)
    h = x
    for i, (w, b) in enumerate(convs):
        h = adj_norm @ (h @ w) + b
        if i < len(convs) - 1:
            g, be = bns[i]
            mean = jnp.mean(h, axis=0, keepdims=True)
            var = jnp.mean((h - mean) ** 2, axis=0, keepdims=True)
            h = jnp.maximum(((h - mean) / jnp.sqrt(var + _BN_EPS)) * g + be, 0.0)
    return h


# --------------------------------------------------------------------------
if __name__ == "__main__":
    N = 16            # nodes
    INPUT_DIM = 8
    HIDDEN_DIM = 32
    OUTPUT_DIM = 4
    NUM_LAYERS = 3

    key = jax.random.PRNGKey(0)
    kx, kadj, kparam = jax.random.split(key, 3)

    x = jax.random.normal(kx, (N, INPUT_DIM), dtype=jnp.float32)
    # binary symmetric adjacency (row sums strictly positive after +I)
    adj = (jax.random.uniform(kadj, (N, N)) > 0.5).astype(jnp.float32)
    adj = jnp.maximum(adj, adj.T)

    convs, bns = init_gcn_params(kparam, INPUT_DIM, HIDDEN_DIM,
                                 OUTPUT_DIM, NUM_LAYERS)

    out = jax.block_until_ready(gcn_forward(x, adj, convs, bns))
    assert out.shape == (N, OUTPUT_DIM), out.shape
    assert jnp.all(jnp.isfinite(out)), "non-finite output"

    ref = gcn_reference(x, adj, convs, bns)
    max_err = float(jnp.max(jnp.abs(out - ref)))
    assert max_err < 1e-1, f"mismatch vs reference: {max_err}"
    print("KERNEL_OK")
</pallas_src>

<mosaic_0001>
module attributes {stable_mosaic.version = 11 : i64} {
  func.func @_fused_gcn_kernel(%arg0: memref<16x16xbf16, #tpu.memory_space<vmem>>, %arg1: memref<16x128xf32, #tpu.memory_space<vmem>>, %arg2: memref<128x128xbf16, #tpu.memory_space<vmem>>, %arg3: memref<1x128xf32, #tpu.memory_space<vmem>>, %arg4: memref<1x128xf32, #tpu.memory_space<vmem>>, %arg5: memref<128x128xbf16, #tpu.memory_space<vmem>>, %arg6: memref<1x128xf32, #tpu.memory_space<vmem>>, %arg7: memref<1x128xf32, #tpu.memory_space<vmem>>, %arg8: memref<128x128xbf16, #tpu.memory_space<vmem>>, %arg9: memref<1x128xf32, #tpu.memory_space<vmem>>, %arg10: memref<16x128xf32, #tpu.memory_space<vmem>>) attributes {dimension_semantics = [], scalar_prefetch = 0 : i64, scratch_operands = 0 : i64, tpu.core_type = #tpu.core_type<tc>} {
    %c0 = arith.constant 0 : index
    %c0_0 = arith.constant 0 : index
    %0 = vector.load %arg0[%c0, %c0_0] : memref<16x16xbf16, #tpu.memory_space<vmem>>, vector<16x16xbf16>
    %1 = arith.extf %0 : vector<16x16xbf16> to vector<16x16xf32>
    %cst = arith.constant dense<0.000000e+00> : vector<16xf32>
    %2 = vector.multi_reduction <add>, %1, %cst [1] : vector<16x16xf32> to vector<16xf32>
    %3 = vector.shape_cast %2 : vector<16xf32> to vector<16x1xf32>
    %cst_1 = arith.constant 1.000000e+00 : f32
    %4 = vector.broadcast %cst_1 : f32 to vector<16x1xf32>
    %5 = arith.addf %3, %4 : vector<16x1xf32>
    %6 = tpu.reciprocal %5 {approx = true} : vector<16x1xf32> -> vector<16x1xf32>
    %c0_2 = arith.constant 0 : index
    %c0_3 = arith.constant 0 : index
    %7 = vector.load %arg1[%c0_2, %c0_3] : memref<16x128xf32, #tpu.memory_space<vmem>>, vector<16x128xf32>
    %c0_4 = arith.constant 0 : index
    %c0_5 = arith.constant 0 : index
    %8 = vector.load %arg2[%c0_4, %c0_5] : memref<128x128xbf16, #tpu.memory_space<vmem>>, vector<128x128xbf16>
    %9 = arith.truncf %7 : vector<16x128xf32> to vector<16x128xbf16>
    %cst_6 = arith.constant dense<0.000000e+00> : vector<16x128xf32>
    %10 = tpu.matmul %9, %8, %cst_6 {dimension_numbers = #tpu.dot_dimension_numbers<[1], [0], [0], [1], [0, 0, 1, 1], [], []>} : vector<16x128xbf16>, vector<128x128xbf16>, vector<16x128xf32> -> vector<16x128xf32>
    %11 = arith.truncf %10 : vector<16x128xf32> to vector<16x128xbf16>
    %cst_7 = arith.constant dense<0.000000e+00> : vector<16x128xf32>
    %12 = tpu.matmul %0, %11, %cst_7 {dimension_numbers = #tpu.dot_dimension_numbers<[1], [0], [0], [1], [0, 0, 1, 1], [], []>} : vector<16x16xbf16>, vector<16x128xbf16>, vector<16x128xf32> -> vector<16x128xf32>
    %13 = arith.addf %12, %10 : vector<16x128xf32>
    %14 = vector.broadcast %6 : vector<16x1xf32> to vector<16x128xf32>
    %15 = arith.mulf %13, %14 : vector<16x128xf32>
    %c0_8 = arith.constant 0 : index
    %c0_9 = arith.constant 0 : index
    %16 = vector.load %arg3[%c0_8, %c0_9] : memref<1x128xf32, #tpu.memory_space<vmem>>, vector<1x128xf32>
    %c0_10 = arith.constant 0 : index
    %c0_11 = arith.constant 0 : index
    %17 = vector.load %arg4[%c0_10, %c0_11] : memref<1x128xf32, #tpu.memory_space<vmem>>, vector<1x128xf32>
    %cst_12 = arith.constant dense<0.000000e+00> : vector<128xf32>
    %18 = vector.multi_reduction <add>, %15, %cst_12 [0] : vector<16x128xf32> to vector<128xf32>
    %19 = vector.shape_cast %18 : vector<128xf32> to vector<1x128xf32>
    %cst_13 = arith.constant 6.250000e-02 : f32
    %20 = vector.broadcast %cst_13 : f32 to vector<1x128xf32>
    %21 = arith.mulf %19, %20 : vector<1x128xf32>
    %22 = arith.mulf %15, %15 : vector<16x128xf32>
    %cst_14 = arith.constant dense<0.000000e+00> : vector<128xf32>
    %23 = vector.multi_reduction <add>, %22, %cst_14 [0] : vector<16x128xf32> to vector<128xf32>
    %24 = vector.shape_cast %23 : vector<128xf32> to vector<1x128xf32>
    %cst_15 = arith.constant 6.250000e-02 : f32
    %25 = vector.broadcast %cst_15 : f32 to vector<1x128xf32>
    %26 = arith.mulf %24, %25 : vector<1x128xf32>
    %27 = arith.mulf %21, %21 : vector<1x128xf32>
    %28 = arith.subf %26, %27 : vector<1x128xf32>
    %cst_16 = arith.constant 0.000000e+00 : f32
    %29 = vector.broadcast %cst_16 : f32 to vector<1x128xf32>
    %30 = arith.maximumf %28, %29 : vector<1x128xf32>
    %cst_17 = arith.constant 9.99999974E-6 : f32
    %31 = vector.broadcast %cst_17 : f32 to vector<1x128xf32>
    %32 = arith.addf %30, %31 : vector<1x128xf32>
    %33 = math.rsqrt %32 : vector<1x128xf32>
    %34 = arith.mulf %16, %33 : vector<1x128xf32>
    %35 = arith.mulf %21, %34 : vector<1x128xf32>
    %36 = arith.subf %17, %35 : vector<1x128xf32>
    %37 = vector.broadcast %34 : vector<1x128xf32> to vector<16x128xf32>
    %38 = arith.mulf %15, %37 : vector<16x128xf32>
    %39 = vector.broadcast %36 : vector<1x128xf32> to vector<16x128xf32>
    %40 = arith.addf %38, %39 : vector<16x128xf32>
    %cst_18 = arith.constant 0.000000e+00 : f32
    %41 = vector.broadcast %cst_18 : f32 to vector<16x128xf32>
    %42 = arith.maximumf %40, %41 : vector<16x128xf32>
    %c0_19 = arith.constant 0 : index
    %c0_20 = arith.constant 0 : index
    %43 = vector.load %arg5[%c0_19, %c0_20] : memref<128x128xbf16, #tpu.memory_space<vmem>>, vector<128x128xbf16>
    %44 = arith.truncf %42 : vector<16x128xf32> to vector<16x128xbf16>
    %cst_21 = arith.constant dense<0.000000e+00> : vector<16x128xf32>
    %45 = tpu.matmul %44, %43, %cst_21 {dimension_numbers = #tpu.dot_dimension_numbers<[1], [0], [0], [1], [0, 0, 1, 1], [], []>} : vector<16x128xbf16>, vector<128x128xbf16>, vector<16x128xf32> -> vector<16x128xf32>
    %46 = arith.truncf %45 : vector<16x128xf32> to vector<16x128xbf16>
    %cst_22 = arith.constant dense<0.000000e+00> : vector<16x128xf32>
    %47 = tpu.matmul %0, %46, %cst_22 {dimension_numbers = #tpu.dot_dimension_numbers<[1], [0], [0], [1], [0, 0, 1, 1], [], []>} : vector<16x16xbf16>, vector<16x128xbf16>, vector<16x128xf32> -> vector<16x128xf32>
    %48 = arith.addf %47, %45 : vector<16x128xf32>
    %49 = vector.broadcast %6 : vector<16x1xf32> to vector<16x128xf32>
    %50 = arith.mulf %48, %49 : vector<16x128xf32>
    %c0_23 = arith.constant 0 : index
    %c0_24 = arith.constant 0 : index
    %51 = vector.load %arg6[%c0_23, %c0_24] : memref<1x128xf32, #tpu.memory_space<vmem>>, vector<1x128xf32>
    %c0_25 = arith.constant 0 : index
    %c0_26 = arith.constant 0 : index
    %52 = vector.load %arg7[%c0_25, %c0_26] : memref<1x128xf32, #tpu.memory_space<vmem>>, vector<1x128xf32>
    %cst_27 = arith.constant dense<0.000000e+00> : vector<128xf32>
    %53 = vector.multi_reduction <add>, %50, %cst_27 [0] : vector<16x128xf32> to vector<128xf32>
    %54 = vector.shape_cast %53 : vector<128xf32> to vector<1x128xf32>
    %cst_28 = arith.constant 6.250000e-02 : f32
    %55 = vector.broadcast %cst_28 : f32 to vector<1x128xf32>
    %56 = arith.mulf %54, %55 : vector<1x128xf32>
    %57 = arith.mulf %50, %50 : vector<16x128xf32>
    %cst_29 = arith.constant dense<0.000000e+00> : vector<128xf32>
    %58 = vector.multi_reduction <add>, %57, %cst_29 [0] : vector<16x128xf32> to vector<128xf32>
    %59 = vector.shape_cast %58 : vector<128xf32> to vector<1x128xf32>
    %cst_30 = arith.constant 6.250000e-02 : f32
    %60 = vector.broadcast %cst_30 : f32 to vector<1x128xf32>
    %61 = arith.mulf %59, %60 : vector<1x128xf32>
    %62 = arith.mulf %56, %56 : vector<1x128xf32>
    %63 = arith.subf %61, %62 : vector<1x128xf32>
    %cst_31 = arith.constant 0.000000e+00 : f32
    %64 = vector.broadcast %cst_31 : f32 to vector<1x128xf32>
    %65 = arith.maximumf %63, %64 : vector<1x128xf32>
    %cst_32 = arith.constant 9.99999974E-6 : f32
    %66 = vector.broadcast %cst_32 : f32 to vector<1x128xf32>
    %67 = arith.addf %65, %66 : vector<1x128xf32>
    %68 = math.rsqrt %67 : vector<1x128xf32>
    %69 = arith.mulf %51, %68 : vector<1x128xf32>
    %70 = arith.mulf %56, %69 : vector<1x128xf32>
    %71 = arith.subf %52, %70 : vector<1x128xf32>
    %72 = vector.broadcast %69 : vector<1x128xf32> to vector<16x128xf32>
    %73 = arith.mulf %50, %72 : vector<16x128xf32>
    %74 = vector.broadcast %71 : vector<1x128xf32> to vector<16x128xf32>
    %75 = arith.addf %73, %74 : vector<16x128xf32>
    %cst_33 = arith.constant 0.000000e+00 : f32
    %76 = vector.broadcast %cst_33 : f32 to vector<16x128xf32>
    %77 = arith.maximumf %75, %76 : vector<16x128xf32>
    %c0_34 = arith.constant 0 : index
    %c0_35 = arith.constant 0 : index
    %78 = vector.load %arg8[%c0_34, %c0_35] : memref<128x128xbf16, #tpu.memory_space<vmem>>, vector<128x128xbf16>
    %79 = arith.truncf %77 : vector<16x128xf32> to vector<16x128xbf16>
    %cst_36 = arith.constant dense<0.000000e+00> : vector<16x128xf32>
    %80 = tpu.matmul %79, %78, %cst_36 {dimension_numbers = #tpu.dot_dimension_numbers<[1], [0], [0], [1], [0, 0, 1, 1], [], []>} : vector<16x128xbf16>, vector<128x128xbf16>, vector<16x128xf32> -> vector<16x128xf32>
    %81 = arith.truncf %80 : vector<16x128xf32> to vector<16x128xbf16>
    %cst_37 = arith.constant dense<0.000000e+00> : vector<16x128xf32>
    %82 = tpu.matmul %0, %81, %cst_37 {dimension_numbers = #tpu.dot_dimension_numbers<[1], [0], [0], [1], [0, 0, 1, 1], [], []>} : vector<16x16xbf16>, vector<16x128xbf16>, vector<16x128xf32> -> vector<16x128xf32>
    %83 = arith.addf %82, %80 : vector<16x128xf32>
    %84 = vector.broadcast %6 : vector<16x1xf32> to vector<16x128xf32>
    %85 = arith.mulf %83, %84 : vector<16x128xf32>
    %c0_38 = arith.constant 0 : index
    %c0_39 = arith.constant 0 : index
    %86 = vector.load %arg9[%c0_38, %c0_39] : memref<1x128xf32, #tpu.memory_space<vmem>>, vector<1x128xf32>
    %87 = vector.broadcast %86 : vector<1x128xf32> to vector<16x128xf32>
    %88 = arith.addf %85, %87 : vector<16x128xf32>
    %c0_40 = arith.constant 0 : index
    %c0_41 = arith.constant 0 : index
    %89 = vector.load %arg10[%c0_40, %c0_41] : memref<16x128xf32, #tpu.memory_space<vmem>>, vector<16x128xf32>
    tpu.vector_store %arg10[%c0_40, %c0_41], %88 {strides = array<i32>} : memref<16x128xf32, #tpu.memory_space<vmem>>, vector<16x128xf32>,
    return
  }
}

</mosaic_0001>

<llo_original>
// kernel: gcn_forward.1
$region0: #{gcn_forward.1}
  #allocation0 [shape = 'u32[]', space=smem, size = 0x4, offset = 0x4, fixed_abs, tag = 'smem constant byte address 0x4 - core index']
  #allocation1 [shape = 'u32[144,128]{1,0:T(1,128)}', space=vmem, size = 0x12000, scoped, tag = 'internal scratch']
  %s0 = inlined_call_operand.vmem [shape: bf16[16,16], index: 0, kind: input, shape index: {}]
  %s1 = inlined_call_operand.vmem [shape: f32[16,128], index: 1, kind: input, shape index: {}]
  %s2 = inlined_call_operand.vmem [shape: bf16[128,128], index: 2, kind: input, shape index: {}]
  %s3 = inlined_call_operand.vmem [shape: f32[1,128], index: 3, kind: input, shape index: {}]
  %s4 = inlined_call_operand.vmem [shape: f32[1,128], index: 4, kind: input, shape index: {}]
  %s5 = inlined_call_operand.vmem [shape: bf16[128,128], index: 5, kind: input, shape index: {}]
  %s6 = inlined_call_operand.vmem [shape: f32[1,128], index: 6, kind: input, shape index: {}]
  %s7 = inlined_call_operand.vmem [shape: f32[1,128], index: 7, kind: input, shape index: {}]
  %s8 = inlined_call_operand.vmem [shape: bf16[128,128], index: 8, kind: input, shape index: {}]
  %s9 = inlined_call_operand.vmem [shape: f32[1,128], index: 9, kind: input, shape index: {}]
  %s10 = inlined_call_operand.vmem [shape: f32[16,128], index: 10, kind: output, shape index: {}]
  %s11 = sld [smem:[#allocation0]]
  $region50: #{gcn_forward.1} parent=0
    _
  %s13 = ssub.s32 1, %s11
  %s14 = scalar_select 0, %s13, %s11
  // Predicated region
  $region2: #{gcn_forward.1} parent=0 // pred_check
    _
  $region3: #{gcn_forward.1} parent=0 // pred_check_branch
    %16 = sbr.rel (0) target = $region5
  $region4: #{gcn_forward.1} parent=0 // pred_region
    _
  $region5: #{gcn_forward.1} parent=0 // pred_fallthru
    _
  // Predicated region
  $region6: #{gcn_forward.1} parent=0 // pred_check
    _
  $region7: #{gcn_forward.1} parent=0 // pred_check_branch
    %18 = sbr.rel (0) target = $region9
  $region8: #{gcn_forward.1} parent=0 // pred_region
    _
  $region9: #{gcn_forward.1} parent=0 // pred_fallthru
    _
  // Predicated region
  $region10: #{gcn_forward.1} parent=0 // pred_check
    _
  $region11: #{gcn_forward.1} parent=0 // pred_check_branch
    %20 = sbr.rel (0) target = $region13
  $region12: #{gcn_forward.1} parent=0 // pred_region
    _
  $region13: #{gcn_forward.1} parent=0 // pred_fallthru
    _
  // Predicated region
  $region14: #{gcn_forward.1} parent=0 // pred_check
    _
  $region15: #{gcn_forward.1} parent=0 // pred_check_branch
    %22 = sbr.rel (0) target = $region17
  $region16: #{gcn_forward.1} parent=0 // pred_region
    _
  $region17: #{gcn_forward.1} parent=0 // pred_fallthru
    _
  // Predicated region
  $region18: #{gcn_forward.1} parent=0 // pred_check
    _
  $region19: #{gcn_forward.1} parent=0 // pred_check_branch
    %24 = sbr.rel (0) target = $region21
  $region20: #{gcn_forward.1} parent=0 // pred_region
    _
  $region21: #{gcn_forward.1} parent=0 // pred_fallthru
    _
  // Predicated region
  $region22: #{gcn_forward.1} parent=0 // pred_check
    _
  $region23: #{gcn_forward.1} parent=0 // pred_check_branch
    %26 = sbr.rel (0) target = $region25
  $region24: #{gcn_forward.1} parent=0 // pred_region
    _
  $region25: #{gcn_forward.1} parent=0 // pred_fallthru
    _
  // Predicated region
  $region26: #{gcn_forward.1} parent=0 // pred_check
    _
  $region27: #{gcn_forward.1} parent=0 // pred_check_branch
    %28 = sbr.rel (0) target = $region29
  $region28: #{gcn_forward.1} parent=0 // pred_region
    _
  $region29: #{gcn_forward.1} parent=0 // pred_fallthru
    _
  // Predicated region
  $region30: #{gcn_forward.1} parent=0 // pred_check
    _
  $region31: #{gcn_forward.1} parent=0 // pred_check_branch
    %30 = sbr.rel (0) target = $region33
  $region32: #{gcn_forward.1} parent=0 // pred_region
    _
  $region33: #{gcn_forward.1} parent=0 // pred_fallthru
    _
  // Predicated region
  $region34: #{gcn_forward.1} parent=0 // pred_check
    _
  $region35: #{gcn_forward.1} parent=0 // pred_check_branch
    %32 = sbr.rel (0) target = $region37
  $region36: #{gcn_forward.1} parent=0 // pred_region
    _
  $region37: #{gcn_forward.1} parent=0 // pred_fallthru
    _
  // Predicated region
  $region38: #{gcn_forward.1} parent=0 // pred_check
    _
  $region39: #{gcn_forward.1} parent=0 // pred_check_branch
    %34 = sbr.rel (0) target = $region41
  $region40: #{gcn_forward.1} parent=0 // pred_region
    _
  $region41: #{gcn_forward.1} parent=0 // pred_fallthru
    _
  %v36 = vld [vmem:[%s0] sm:$0xf]
  %v37 = vld [vmem:[%s0 + $0x4] sm:$0xf]
  %v38 = vunpack.c.l.bf16 %v36
  %v39 = vunpack.c.l.bf16 %v37
  %vm40 = vcmask 130048
  %v41 = vsel %vm40, %v38, 0.0
  %42 = vadd.xlane.f32.xlu0 %v41
  %v43 = vpop.xlane.xlu0 %42
  %v44 = vsel %vm40, %v39, 0.0
  %45 = vadd.xlane.f32.xlu0 %v44
  %v46 = vpop.xlane.xlu0 %45
  %v47 = vadd.f32 %v43, 1.0
  %v48 = vadd.f32 %v46, 1.0
  %v49 = vrcp.pop %v47
  %v50 = vrcp.pop %v48
  %v51 = vld [vmem:[%s1] sm:$0xff]
  %v52 = vld [vmem:[%s1 + $0x8] sm:$0xff]
  %v53 = vld [vmem:[%s2] sm:$0xf]
  %v54 = vld [vmem:[%s2 + $0x4] sm:$0xf]
  %v55 = vld [vmem:[%s2 + $0x8] sm:$0xf]
  %v56 = vld [vmem:[%s2 + $0xc] sm:$0xf]
  %v57 = vld [vmem:[%s2 + $0x10] sm:$0xf]
  %v58 = vld [vmem:[%s2 + $0x14] sm:$0xf]
  %v59 = vld [vmem:[%s2 + $0x18] sm:$0xf]
  %v60 = vld [vmem:[%s2 + $0x1c] sm:$0xf]
  %v61 = vld [vmem:[%s2 + $0x20] sm:$0xf]
  %v62 = vld [vmem:[%s2 + $0x24] sm:$0xf]
  %v63 = vld [vmem:[%s2 + $0x28] sm:$0xf]
  %v64 = vld [vmem:[%s2 + $0x2c] sm:$0xf]
  %v65 = vld [vmem:[%s2 + $0x30] sm:$0xf]
  %v66 = vld [vmem:[%s2 + $0x34] sm:$0xf]
  %v67 = vld [vmem:[%s2 + $0x38] sm:$0xf]
  %v68 = vld [vmem:[%s2 + $0x3c] sm:$0xf]
  %v69 = vpack.c.bf16 %v52, %v51
  %v86 = vunpack.c.l.b16 %v53
  %v87 = vunpack.c.l.b16 %v54
  %v88 = vunpack.c.l.b16 %v55
  %v89 = vunpack.c.l.b16 %v56
  %v90 = vunpack.c.l.b16 %v57
  %v91 = vunpack.c.l.b16 %v58
  %v92 = vunpack.c.l.b16 %v59
  %v93 = vunpack.c.l.b16 %v60
  %v94 = vunpack.c.l.b16 %v61
  %v95 = vunpack.c.l.b16 %v62
  %v96 = vunpack.c.l.b16 %v63
  %v97 = vunpack.c.l.b16 %v64
  %v98 = vunpack.c.l.b16 %v65
  %v99 = vunpack.c.l.b16 %v66
  %v100 = vunpack.c.l.b16 %v67
  %v101 = vunpack.c.l.b16 %v68
  %v102 = vpack.c.b16 %v87, %v86
  %v103 = vpack.c.b16 %v89, %v88
  %v104 = vpack.c.b16 %v91, %v90
  %v105 = vpack.c.b16 %v93, %v92
  %v106 = vpack.c.b16 %v95, %v94
  %v107 = vpack.c.b16 %v97, %v96
  %v108 = vpack.c.b16 %v99, %v98
  %v109 = vpack.c.b16 %v101, %v100
  %118 = vmatprep.subr.bf16.mxu0 0
  %119 = vmatpush1.bf16.msra.mxu0 %v109
  %120 = vmatprep.subr.bf16.mxu0 0
  %121 = vmatpush1.bf16.msra.mxu0 %v108
  %122 = vmatprep.subr.bf16.mxu0 0
  %123 = vmatpush1.bf16.msra.mxu0 %v107
  %124 = vmatprep.subr.bf16.mxu0 0
  %125 = vmatpush1.bf16.msra.mxu0 %v106
  %126 = vmatprep.subr.bf16.mxu0 0
  %127 = vmatpush1.bf16.msra.mxu0 %v105
  %128 = vmatprep.subr.bf16.mxu0 0
  %129 = vmatpush1.bf16.msra.mxu0 %v104
  %130 = vmatprep.subr.bf16.mxu0 0
  %131 = vmatpush1.bf16.msra.mxu0 %v103
  %132 = vmatprep.subr.bf16.mxu0 0
  %133 = vmatpush1.bf16.msra.mxu0 %v102
  %134 = vmatprep.subr.bf16.mxu0 0
  %135 = vmatpush2.bf16.msra.mxu0 0
  %136 = vmatprep.subr.bf16.mxu0 0
  %137 = vmatpush2.bf16.msra.mxu0 0
  %138 = vmatprep.subr.bf16.mxu0 0
  %139 = vmatpush2.bf16.msra.mxu0 0
  %140 = vmatprep.subr.bf16.mxu0 0
  %141 = vmatpush2.bf16.msra.mxu0 0
  %142 = vmatprep.subr.bf16.mxu0 0
  %143 = vmatpush2.bf16.msra.mxu0 0
  %144 = vmatprep.subr.bf16.mxu0 0
  %145 = vmatpush2.bf16.msra.mxu0 0
  %146 = vmatprep.subr.bf16.mxu0 0
  %147 = vmatpush2.bf16.msra.mxu0 0
  %148 = vmatprep.subr.bf16.mxu0 0
  %149 = vmatpush2.bf16.msra.mxu0 0
  %150 = vmatprep.mubr.bf16.mxu0 0
  %151 = vmatmul.mubr.bf16.gmra.mxu0 %v69
  %v152 = vpop.f32.mrf.mxu0
  %v153 = vadd.f32 0.0, %v152
  %v154 = vpop.f32.mrf.mxu0
  %v155 = vpop.f32.mrf.mxu0
  %v156 = vadd.f32 0.0, %v155
  %v157 = vpop.f32.mrf.mxu0
  %158 = vdwg.mxu0
  %v159 = vpack.c.bf16 %v156, %v153
  %v162 = vunpack.c.l.b16 %v36
  %v163 = vunpack.c.l.b16 %v37
  %v164 = vpack.c.b16 %v163, %v162
  %v166 = vsel %vm40, %v164, 0
  %168 = vmatprep.subr.bf16.mxu0 0
  %169 = vmatpush1.bf16.msra.mxu0 0
  %170 = vmatprep.subr.bf16.mxu0 0
  %171 = vmatpush1.bf16.msra.mxu0 0
  %172 = vmatprep.subr.bf16.mxu0 0
  %173 = vmatpush1.bf16.msra.mxu0 0
  %174 = vmatprep.subr.bf16.mxu0 0
  %175 = vmatpush1.bf16.msra.mxu0 0
  %176 = vmatprep.subr.bf16.mxu0 0
  %177 = vmatpush1.bf16.msra.mxu0 0
  %178 = vmatprep.subr.bf16.mxu0 0
  %179 = vmatpush1.bf16.msra.mxu0 0
  %180 = vmatprep.subr.bf16.mxu0 0
  %181 = vmatpush1.bf16.msra.mxu0 0
  %182 = vmatprep.subr.bf16.mxu0 0
  %183 = vmatpush1.bf16.msra.mxu0 %v159
  %184 = vmatprep.subr.bf16.mxu0 0
  %185 = vmatpush2.bf16.msra.mxu0 0
  %186 = vmatprep.subr.bf16.mxu0 0
  %187 = vmatpush2.bf16.msra.mxu0 0
  %188 = vmatprep.subr.bf16.mxu0 0
  %189 = vmatpush2.bf16.msra.mxu0 0
  %190 = vmatprep.subr.bf16.mxu0 0
  %191 = vmatpush2.bf16.msra.mxu0 0
  %192 = vmatprep.subr.bf16.mxu0 0
  %193 = vmatpush2.bf16.msra.mxu0 0
  %194 = vmatprep.subr.bf16.mxu0 0
  %195 = vmatpush2.bf16.msra.mxu0 0
  %196 = vmatprep.subr.bf16.mxu0 0
  %197 = vmatpush2.bf16.msra.mxu0 0
  %198 = vmatprep.subr.bf16.mxu0 0
  %199 = vmatpush2.bf16.msra.mxu0 0
  %200 = vmatprep.mubr.bf16.mxu0 0
  %201 = vmatmul.mubr.bf16.gmra.mxu0 %v166
  %v202 = vpop.f32.mrf.mxu0
  %v203 = vadd.f32 %v153, %v202
  %v204 = vpop.f32.mrf.mxu0
  %v205 = vpop.f32.mrf.mxu0
  %v206 = vadd.f32 %v156, %v205
  %v207 = vpop.f32.mrf.mxu0
  %208 = vdwg.mxu0
  %v209 = vmul.f32 %v203, %v49
  %v210 = vmul.f32 %v206, %v50
  %v211 = vld [vmem:[%s3] sm:$0x1]
  %v212 = vld [vmem:[%s4] sm:$0x1]
  %v213 = vadd.f32 %v209, %v210
  %v214 = vrot.slane %v213, 4
  %v215 = vadd.f32 %v213, %v214
  %v216 = vrot.slane %v215, 2
  %v217 = vadd.f32 %v215, %v216
  %v218 = vrot.slane %v217, 1
  %v219 = vadd.f32 %v217, %v218
  %v220 = vmul.f32 %v219, 0.0625
  %v221 = vmul.f32 %v209, %v209
  %v222 = vmul.f32 %v210, %v210
  %v223 = vadd.f32 %v221, %v222
  %v224 = vrot.slane %v223, 4
  %v225 = vadd.f32 %v223, %v224
  %v226 = vrot.slane %v225, 2
  %v227 = vadd.f32 %v225, %v226
  %v228 = vrot.slane %v227, 1
  %v229 = vadd.f32 %v227, %v228
  %v230 = vmul.f32 %v229, 0.0625
  %v231 = vmul.f32 %v220, %v220
  %v232 = vsub.f32 %v230, %v231
  %v233 = vmax.f32 %v232, 0.0
  %v234 = vadd.f32 %v233, 1e-05
  %v235 = vrsqrt.pop %v234
  %v236 = vmul.f32 %v211, %v235
  %v237 = vmul.f32 %v220, %v236
  %v238 = vsub.f32 %v212, %v237
  %v240 = vlaneseq
  %v241 = vshrl.u32 %v240, 7
  %v242 = vsub.s32 0, %v241
  %v243 = vrot.slane %v236, %v242
  %v245 = vmul.f32 %v209, %v243
  %v246 = vmul.f32 %v210, %v243
  %v248 = vlaneseq
  %v249 = vshrl.u32 %v248, 7
  %v250 = vsub.s32 0, %v249
  %v251 = vrot.slane %v238, %v250
  %v253 = vadd.f32 %v245, %v251
  %v254 = vadd.f32 %v246, %v251
  %v255 = vmax.f32 %v253, 0.0
  %v256 = vmax.f32 %v254, 0.0
  %v257 = vld [vmem:[%s5] sm:$0xf]
  %v258 = vld [vmem:[%s5 + $0x4] sm:$0xf]
  %v259 = vld [vmem:[%s5 + $0x8] sm:$0xf]
  %v260 = vld [vmem:[%s5 + $0xc] sm:$0xf]
  %v261 = vld [vmem:[%s5 + $0x10] sm:$0xf]
  %v262 = vld [vmem:[%s5 + $0x14] sm:$0xf]
  %v263 = vld [vmem:[%s5 + $0x18] sm:$0xf]
  %v264 = vld [vmem:[%s5 + $0x1c] sm:$0xf]
  %v265 = vld [vmem:[%s5 + $0x20] sm:$0xf]
  %v266 = vld [vmem:[%s5 + $0x24] sm:$0xf]
  %v267 = vld [vmem:[%s5 + $0x28] sm:$0xf]
  %v268 = vld [vmem:[%s5 + $0x2c] sm:$0xf]
  %v269 = vld [vmem:[%s5 + $0x30] sm:$0xf]
  %v270 = vld [vmem:[%s5 + $0x34] sm:$0xf]
  %v271 = vld [vmem:[%s5 + $0x38] sm:$0xf]
  %v272 = vld [vmem:[%s5 + $0x3c] sm:$0xf]
  %v273 = vpack.c.bf16 %v256, %v255
  %v290 = vunpack.c.l.b16 %v257
  %v291 = vunpack.c.l.b16 %v258
  %v292 = vunpack.c.l.b16 %v259
  %v293 = vunpack.c.l.b16 %v260
  %v294 = vunpack.c.l.b16 %v261
  %v295 = vunpack.c.l.b16 %v262
  %v296 = vunpack.c.l.b16 %v263
  %v297 = vunpack.c.l.b16 %v264
  %v298 = vunpack.c.l.b16 %v265
  %v299 = vunpack.c.l.b16 %v266
  %v300 = vunpack.c.l.b16 %v267
  %v301 = vunpack.c.l.b16 %v268
  %v302 = vunpack.c.l.b16 %v269
  %v303 = vunpack.c.l.b16 %v270
  %v304 = vunpack.c.l.b16 %v271
  %v305 = vunpack.c.l.b16 %v272
  %v306 = vpack.c.b16 %v291, %v290
  %v307 = vpack.c.b16 %v293, %v292
  %v308 = vpack.c.b16 %v295, %v294
  %v309 = vpack.c.b16 %v297, %v296
  %v310 = vpack.c.b16 %v299, %v298
  %v311 = vpack.c.b16 %v301, %v300
  %v312 = vpack.c.b16 %v303, %v302
  %v313 = vpack.c.b16 %v305, %v304
  %322 = vmatprep.subr.bf16.mxu0 0
  %323 = vmatpush1.bf16.msra.mxu0 %v313
  %324 = vmatprep.subr.bf16.mxu0 0
  %325 = vmatpush1.bf16.msra.mxu0 %v312
  %326 = vmatprep.subr.bf16.mxu0 0
  %327 = vmatpush1.bf16.msra.mxu0 %v311
  %328 = vmatprep.subr.bf16.mxu0 0
  %329 = vmatpush1.bf16.msra.mxu0 %v310
  %330 = vmatprep.subr.bf16.mxu0 0
  %331 = vmatpush1.bf16.msra.mxu0 %v309
  %332 = vmatprep.subr.bf16.mxu0 0
  %333 = vmatpush1.bf16.msra.mxu0 %v308
  %334 = vmatprep.subr.bf16.mxu0 0
  %335 = vmatpush1.bf16.msra.mxu0 %v307
  %336 = vmatprep.subr.bf16.mxu0 0
  %337 = vmatpush1.bf16.msra.mxu0 %v306
  %338 = vmatprep.subr.bf16.mxu0 0
  %339 = vmatpush2.bf16.msra.mxu0 0
  %340 = vmatprep.subr.bf16.mxu0 0
  %341 = vmatpush2.bf16.msra.mxu0 0
  %342 = vmatprep.subr.bf16.mxu0 0
  %343 = vmatpush2.bf16.msra.mxu0 0
  %344 = vmatprep.subr.bf16.mxu0 0
  %345 = vmatpush2.bf16.msra.mxu0 0
  %346 = vmatprep.subr.bf16.mxu0 0
  %347 = vmatpush2.bf16.msra.mxu0 0
  %348 = vmatprep.subr.bf16.mxu0 0
  %349 = vmatpush2.bf16.msra.mxu0 0
  %350 = vmatprep.subr.bf16.mxu0 0
  %351 = vmatpush2.bf16.msra.mxu0 0
  %352 = vmatprep.subr.bf16.mxu0 0
  %353 = vmatpush2.bf16.msra.mxu0 0
  %354 = vmatprep.mubr.bf16.mxu0 0
  %355 = vmatmul.mubr.bf16.gmra.mxu0 %v273
  %v356 = vpop.f32.mrf.mxu0
  %v357 = vadd.f32 0.0, %v356
  %v358 = vpop.f32.mrf.mxu0
  %v359 = vpop.f32.mrf.mxu0
  %v360 = vadd.f32 0.0, %v359
  %v361 = vpop.f32.mrf.mxu0
  %362 = vdwg.mxu0
  %v363 = vpack.c.bf16 %v360, %v357
  %364 = vmatprep.subr.bf16.mxu0 0
  %365 = vmatpush1.bf16.msra.mxu0 0
  %366 = vmatprep.subr.bf16.mxu0 0
  %367 = vmatpush1.bf16.msra.mxu0 0
  %368 = vmatprep.subr.bf16.mxu0 0
  %369 = vmatpush1.bf16.msra.mxu0 0
  %370 = vmatprep.subr.bf16.mxu0 0
  %371 = vmatpush1.bf16.msra.mxu0 0
  %372 = vmatprep.subr.bf16.mxu0 0
  %373 = vmatpush1.bf16.msra.mxu0 0
  %374 = vmatprep.subr.bf16.mxu0 0
  %375 = vmatpush1.bf16.msra.mxu0 0
  %376 = vmatprep.subr.bf16.mxu0 0
  %377 = vmatpush1.bf16.msra.mxu0 0
  %378 = vmatprep.subr.bf16.mxu0 0
  %379 = vmatpush1.bf16.msra.mxu0 %v363
  %380 = vmatprep.subr.bf16.mxu0 0
  %381 = vmatpush2.bf16.msra.mxu0 0
  %382 = vmatprep.subr.bf16.mxu0 0
  %383 = vmatpush2.bf16.msra.mxu0 0
  %384 = vmatprep.subr.bf16.mxu0 0
  %385 = vmatpush2.bf16.msra.mxu0 0
  %386 = vmatprep.subr.bf16.mxu0 0
  %387 = vmatpush2.bf16.msra.mxu0 0
  %388 = vmatprep.subr.bf16.mxu0 0
  %389 = vmatpush2.bf16.msra.mxu0 0
  %390 = vmatprep.subr.bf16.mxu0 0
  %391 = vmatpush2.bf16.msra.mxu0 0
  %392 = vmatprep.subr.bf16.mxu0 0
  %393 = vmatpush2.bf16.msra.mxu0 0
  %394 = vmatprep.subr.bf16.mxu0 0
  %395 = vmatpush2.bf16.msra.mxu0 0
  %396 = vmatprep.mubr.bf16.mxu0 0
  %397 = vmatmul.mubr.bf16.gmra.mxu0 %v166
  %v398 = vpop.f32.mrf.mxu0
  %v399 = vadd.f32 %v357, %v398
  %v400 = vpop.f32.mrf.mxu0
  %v401 = vpop.f32.mrf.mxu0
  %v402 = vadd.f32 %v360, %v401
  %v403 = vpop.f32.mrf.mxu0
  %404 = vdwg.mxu0
  %v405 = vmul.f32 %v399, %v49
  %v406 = vmul.f32 %v402, %v50
  %v407 = vld [vmem:[%s6] sm:$0x1]
  %v408 = vld [vmem:[%s7] sm:$0x1]
  %v409 = vadd.f32 %v405, %v406
  %v410 = vrot.slane %v409, 4
  %v411 = vadd.f32 %v409, %v410
  %v412 = vrot.slane %v411, 2
  %v413 = vadd.f32 %v411, %v412
  %v414 = vrot.slane %v413, 1
  %v415 = vadd.f32 %v413, %v414
  %v416 = vmul.f32 %v415, 0.0625
  %v417 = vmul.f32 %v405, %v405
  %v418 = vmul.f32 %v406, %v406
  %v419 = vadd.f32 %v417, %v418
  %v420 = vrot.slane %v419, 4
  %v421 = vadd.f32 %v419, %v420
  %v422 = vrot.slane %v421, 2
  %v423 = vadd.f32 %v421, %v422
  %v424 = vrot.slane %v423, 1
  %v425 = vadd.f32 %v423, %v424
  %v426 = vmul.f32 %v425, 0.0625
  %v427 = vmul.f32 %v416, %v416
  %v428 = vsub.f32 %v426, %v427
  %v429 = vmax.f32 %v428, 0.0
  %v430 = vadd.f32 %v429, 1e-05
  %v431 = vrsqrt.pop %v430
  %v432 = vmul.f32 %v407, %v431
  %v433 = vmul.f32 %v416, %v432
  %v434 = vsub.f32 %v408, %v433
  %v436 = vlaneseq
  %v437 = vshrl.u32 %v436, 7
  %v438 = vsub.s32 0, %v437
  %v439 = vrot.slane %v432, %v438
  %v441 = vmul.f32 %v405, %v439
  %v442 = vmul.f32 %v406, %v439
  %v444 = vlaneseq
  %v445 = vshrl.u32 %v444, 7
  %v446 = vsub.s32 0, %v445
  %v447 = vrot.slane %v434, %v446
  %v449 = vadd.f32 %v441, %v447
  %v450 = vadd.f32 %v442, %v447
  %v451 = vmax.f32 %v449, 0.0
  %v452 = vmax.f32 %v450, 0.0
  %v453 = vld [vmem:[%s8] sm:$0xf]
  %v454 = vld [vmem:[%s8 + $0x4] sm:$0xf]
  %v455 = vld [vmem:[%s8 + $0x8] sm:$0xf]
  %v456 = vld [vmem:[%s8 + $0xc] sm:$0xf]
  %v457 = vld [vmem:[%s8 + $0x10] sm:$0xf]
  %v458 = vld [vmem:[%s8 + $0x14] sm:$0xf]
  %v459 = vld [vmem:[%s8 + $0x18] sm:$0xf]
  %v460 = vld [vmem:[%s8 + $0x1c] sm:$0xf]
  %v461 = vld [vmem:[%s8 + $0x20] sm:$0xf]
  %v462 = vld [vmem:[%s8 + $0x24] sm:$0xf]
  %v463 = vld [vmem:[%s8 + $0x28] sm:$0xf]
  %v464 = vld [vmem:[%s8 + $0x2c] sm:$0xf]
  %v465 = vld [vmem:[%s8 + $0x30] sm:$0xf]
  %v466 = vld [vmem:[%s8 + $0x34] sm:$0xf]
  %v467 = vld [vmem:[%s8 + $0x38] sm:$0xf]
  %v468 = vld [vmem:[%s8 + $0x3c] sm:$0xf]
  %v469 = vpack.c.bf16 %v452, %v451
  %v486 = vunpack.c.l.b16 %v453
  %v487 = vunpack.c.l.b16 %v454
  %v488 = vunpack.c.l.b16 %v455
  %v489 = vunpack.c.l.b16 %v456
  %v490 = vunpack.c.l.b16 %v457
  %v491 = vunpack.c.l.b16 %v458
  %v492 = vunpack.c.l.b16 %v459
  %v493 = vunpack.c.l.b16 %v460
  %v494 = vunpack.c.l.b16 %v461
  %v495 = vunpack.c.l.b16 %v462
  %v496 = vunpack.c.l.b16 %v463
  %v497 = vunpack.c.l.b16 %v464
  %v498 = vunpack.c.l.b16 %v465
  %v499 = vunpack.c.l.b16 %v466
  %v500 = vunpack.c.l.b16 %v467
  %v501 = vunpack.c.l.b16 %v468
  %v502 = vpack.c.b16 %v487, %v486
  %v503 = vpack.c.b16 %v489, %v488
  %v504 = vpack.c.b16 %v491, %v490
  %v505 = vpack.c.b16 %v493, %v492
  %v506 = vpack.c.b16 %v495, %v494
  %v507 = vpack.c.b16 %v497, %v496
  %v508 = vpack.c.b16 %v499, %v498
  %v509 = vpack.c.b16 %v501, %v500
  %518 = vmatprep.subr.bf16.mxu0 0
  %519 = vmatpush1.bf16.msra.mxu0 %v509
  %520 = vmatprep.subr.bf16.mxu0 0
  %521 = vmatpush1.bf16.msra.mxu0 %v508
  %522 = vmatprep.subr.bf16.mxu0 0
  %523 = vmatpush1.bf16.msra.mxu0 %v507
  %524 = vmatprep.subr.bf16.mxu0 0
  %525 = vmatpush1.bf16.msra.mxu0 %v506
  %526 = vmatprep.subr.bf16.mxu0 0
  %527 = vmatpush1.bf16.msra.mxu0 %v505
  %528 = vmatprep.subr.bf16.mxu0 0
  %529 = vmatpush1.bf16.msra.mxu0 %v504
  %530 = vmatprep.subr.bf16.mxu0 0
  %531 = vmatpush1.bf16.msra.mxu0 %v503
  %532 = vmatprep.subr.bf16.mxu0 0
  %533 = vmatpush1.bf16.msra.mxu0 %v502
  %534 = vmatprep.subr.bf16.mxu0 0
  %535 = vmatpush2.bf16.msra.mxu0 0
  %536 = vmatprep.subr.bf16.mxu0 0
  %537 = vmatpush2.bf16.msra.mxu0 0
  %538 = vmatprep.subr.bf16.mxu0 0
  %539 = vmatpush2.bf16.msra.mxu0 0
  %540 = vmatprep.subr.bf16.mxu0 0
  %541 = vmatpush2.bf16.msra.mxu0 0
  %542 = vmatprep.subr.bf16.mxu0 0
  %543 = vmatpush2.bf16.msra.mxu0 0
  %544 = vmatprep.subr.bf16.mxu0 0
  %545 = vmatpush2.bf16.msra.mxu0 0
  %546 = vmatprep.subr.bf16.mxu0 0
  %547 = vmatpush2.bf16.msra.mxu0 0
  %548 = vmatprep.subr.bf16.mxu0 0
  %549 = vmatpush2.bf16.msra.mxu0 0
  %550 = vmatprep.mubr.bf16.mxu0 0
  %551 = vmatmul.mubr.bf16.gmra.mxu0 %v469
  %v552 = vpop.f32.mrf.mxu0
  %v553 = vadd.f32 0.0, %v552
  %v554 = vpop.f32.mrf.mxu0
  %v555 = vpop.f32.mrf.mxu0
  %v556 = vadd.f32 0.0, %v555
  %v557 = vpop.f32.mrf.mxu0
  %558 = vdwg.mxu0
  %v559 = vpack.c.bf16 %v556, %v553
  %560 = vmatprep.subr.bf16.mxu0 0
  %561 = vmatpush1.bf16.msra.mxu0 0
  %562 = vmatprep.subr.bf16.mxu0 0
  %563 = vmatpush1.bf16.msra.mxu0 0
  %564 = vmatprep.subr.bf16.mxu0 0
  %565 = vmatpush1.bf16.msra.mxu0 0
  %566 = vmatprep.subr.bf16.mxu0 0
  %567 = vmatpush1.bf16.msra.mxu0 0
  %568 = vmatprep.subr.bf16.mxu0 0
  %569 = vmatpush1.bf16.msra.mxu0 0
  %570 = vmatprep.subr.bf16.mxu0 0
  %571 = vmatpush1.bf16.msra.mxu0 0
  %572 = vmatprep.subr.bf16.mxu0 0
  %573 = vmatpush1.bf16.msra.mxu0 0
  %574 = vmatprep.subr.bf16.mxu0 0
  %575 = vmatpush1.bf16.msra.mxu0 %v559
  %576 = vmatprep.subr.bf16.mxu0 0
  %577 = vmatpush2.bf16.msra.mxu0 0
  %578 = vmatprep.subr.bf16.mxu0 0
  %579 = vmatpush2.bf16.msra.mxu0 0
  %580 = vmatprep.subr.bf16.mxu0 0
  %581 = vmatpush2.bf16.msra.mxu0 0
  %582 = vmatprep.subr.bf16.mxu0 0
  %583 = vmatpush2.bf16.msra.mxu0 0
  %584 = vmatprep.subr.bf16.mxu0 0
  %585 = vmatpush2.bf16.msra.mxu0 0
  %586 = vmatprep.subr.bf16.mxu0 0
  %587 = vmatpush2.bf16.msra.mxu0 0
  %588 = vmatprep.subr.bf16.mxu0 0
  %589 = vmatpush2.bf16.msra.mxu0 0
  %590 = vmatprep.subr.bf16.mxu0 0
  %591 = vmatpush2.bf16.msra.mxu0 0
  %592 = vmatprep.mubr.bf16.mxu0 0
  %593 = vmatmul.mubr.bf16.gmra.mxu0 %v166
  %v594 = vpop.f32.mrf.mxu0
  %v595 = vadd.f32 %v553, %v594
  %v596 = vpop.f32.mrf.mxu0
  %v597 = vpop.f32.mrf.mxu0
  %v598 = vadd.f32 %v556, %v597
  %v599 = vpop.f32.mrf.mxu0
  %600 = vdwg.mxu0
  %v601 = vmul.f32 %v595, %v49
  %v602 = vmul.f32 %v598, %v50
  %v603 = vld [vmem:[%s9] sm:$0x1]
  %v605 = vlaneseq
  %v606 = vshrl.u32 %v605, 7
  %v607 = vsub.s32 0, %v606
  %v608 = vrot.slane %v603, %v607
  %v610 = vadd.f32 %v601, %v608
  %v611 = vadd.f32 %v602, %v608
  %612 = vst [vmem:[%s10] sm:$0xff] %v610
  %613 = vst [vmem:[%s10 + $0x8] sm:$0xff] %v611
  // Predicated region
  $region42: #{gcn_forward.1} parent=0 // pred_check
    _
  $region43: #{gcn_forward.1} parent=0 // pred_check_branch
    %615 = sbr.rel (0) target = $region45
  $region44: #{gcn_forward.1} parent=0 // pred_region
    _
  $region45: #{gcn_forward.1} parent=0 // pred_fallthru
    _
  // Predicated region
  $region46: #{gcn_forward.1} parent=0 // pred_check
    _
  $region47: #{gcn_forward.1} parent=0 // pred_check_branch
    %617 = sbr.rel (0) target = $region49
  $region48: #{gcn_forward.1} parent=0 // pred_region
    _
  $region49: #{gcn_forward.1} parent=0 // pred_fallthru
    _

</llo_original>
